<compile_context>
chip_gen: v5e
topology: v5e:2x2
jax: 0.10.0
libtpu: 0.0.40
codegen_flags: <defaults>
</compile_context>

<pallas_src>
import functools
import math

import jax
import jax.numpy as jnp
from jax.experimental import pallas as pl
from jax.experimental.pallas import tpu as pltpu


def _add_pe_kernel(x_ref, pe_ref, o_ref):
    """o = x + pe; x/o block: (tB, tS, C), pe block: (tS, C), add in f32."""
    x = x_ref[...].astype(jnp.float32)
    pe = pe_ref[...].astype(jnp.float32)
    o_ref[...] = (x + pe[None, :, :]).astype(o_ref.dtype)


@functools.lru_cache(maxsize=64)
def _pe_table(seq_len: int, d_model: int, dtype_name: str):
    """Sinusoidal table identical to the PyTorch buffer (rows 0..seq_len-1), cached."""
    position = jnp.arange(seq_len, dtype=jnp.float32)[:, None]
    div_term = jnp.exp(
        jnp.arange(0, d_model, 2, dtype=jnp.float32) * (-math.log(10000.0) / d_model)
    )
    angle = position * div_term                                  # (S, ceil(D/2))
    pe = jnp.zeros((seq_len, d_model), dtype=jnp.float32)
    pe = pe.at[:, 0::2].set(jnp.sin(angle))
    pe = pe.at[:, 1::2].set(jnp.cos(angle[:, : d_model // 2]))   # handles odd D gracefully
    return jax.device_put(pe.astype(jnp.dtype(dtype_name)))


def _vmem_budget_bytes():
    """(vmem_limit_bytes, data_budget_bytes) derived from the actual chip's VMEM."""
    try:
        phys = pltpu.get_tpu_info().vmem_capacity_bytes
    except Exception:
        phys = 64 * 1024 * 1024                                  # v7x-safe default
    # ~70% of physical, capped; leaves headroom for compiler internal scratch on v7x.
    vmem_limit = max(32 * 1024 * 1024, min(int(0.70 * phys), 64 * 1024 * 1024))
    data_budget = vmem_limit - 8 * 1024 * 1024
    return vmem_limit, data_budget


def _choose_tiles(B, Sf, C, x_itemsize, pe_itemsize, data_budget):
    """Pick (tB, tS) so double-buffered (x + out + pe) tiles fit the budget.

    Maximize tS first (ideally the full folded sequence), then pack as many batch rows
    per step as the remaining budget allows so every grid step moves several MiB.
    """
    # dtype-aware sublane alignment: 8 rows for 4B, 16 for 2B, 32 for 1B elements
    sub = 8 * max(1, 4 // max(1, x_itemsize))
    x_row = 2 * 2 * C * x_itemsize          # double-buffered x + out, one seq row, tB=1
    pe_row = 2 * C * pe_itemsize            # double-buffered pe, one seq row
    max_rows = max(sub, data_budget // max(1, x_row + pe_row))
    if Sf <= max_rows:
        tS = Sf                             # full extent: always a legal block
    else:
        tS = max(sub, (min(Sf, max_rows) // sub) * sub)
    remaining = max(0, data_budget - tS * pe_row)
    per_batch = max(1, tS * 2 * 2 * C * x_itemsize)
    tB = max(1, min(B, remaining // per_batch))
    while B % tB:                           # keep batch blocks exact (B is small in practice)
        tB -= 1
    return int(tB), int(tS)


@jax.jit
def _pe_add(x: jax.Array, pe: jax.Array) -> jax.Array:
    B, S, D = x.shape

    # Lane-dense fold: (S, D) -> (Sf, C) with C a multiple of 128 whenever S allows it.
    k = 1
    if D < 128:
        kk = math.lcm(D, 128) // D
        if S % kk == 0:
            k = kk
    Sf, C = S // k, k * D
    x_f = x.reshape(B, Sf, C)
    pe_f = pe.reshape(Sf, C)

    vmem_limit, data_budget = _vmem_budget_bytes()
    tB, tS = _choose_tiles(B, Sf, C, x.dtype.itemsize, pe.dtype.itemsize, data_budget)
    grid = (pl.cdiv(Sf, tS), pl.cdiv(B, tB))                     # batch inner: pe tile reused

    out = pl.pallas_call(
        _add_pe_kernel,
        out_shape=jax.ShapeDtypeStruct((B, Sf, C), x.dtype),
        grid_spec=pltpu.PrefetchScalarGridSpec(
            num_scalar_prefetch=0,
            grid=grid,
            in_specs=[
                pl.BlockSpec((tB, tS, C), lambda s, b: (b, s, 0)),   # x tile
                pl.BlockSpec((tS, C), lambda s, b: (s, 0)),          # pe tile (batch-invariant)
            ],
            out_specs=pl.BlockSpec((tB, tS, C), lambda s, b: (b, s, 0)),
        ),
        compiler_params=pltpu.CompilerParams(
            dimension_semantics=("parallel", "parallel"),        # no reduction; v7x can use both TCs
            vmem_limit_bytes=vmem_limit,
        ),
        cost_estimate=pl.CostEstimate(
            flops=int(B) * int(S) * int(D),
            transcendentals=0,
            bytes_accessed=2 * x.size * x.dtype.itemsize + pe.size * pe.dtype.itemsize,
        ),
    )(x_f, pe_f)
    return out.reshape(B, S, D)


def positional_encoding(x: jax.Array) -> jax.Array:
    """x: [batch, seq_len, d_model] -> x + pe[:, :seq_len, :]."""
    _, S, D = x.shape
    # Store pe in x.dtype for half-precision inputs (halves pe HBM traffic / VMEM);
    # the in-kernel add still happens in f32.
    if jnp.issubdtype(x.dtype, jnp.floating) and jnp.dtype(x.dtype).itemsize == 2:
        pe_dtype = jnp.dtype(x.dtype)
    else:
        pe_dtype = jnp.dtype(jnp.float32)
    pe = _pe_table(int(S), int(D), pe_dtype.name)
    return _pe_add(x, pe)


def positional_encoding_ref(x: jax.Array, max_len: int = 5000) -> jax.Array:
    """Pure-JAX reference mirroring the PyTorch buffer construction + forward."""
    _, S, D = x.shape
    position = jnp.arange(max_len, dtype=jnp.float32)[:, None]
    div_term = jnp.exp(jnp.arange(0, D, 2, dtype=jnp.float32) * (-math.log(10000.0) / D))
    pe = jnp.zeros((max_len, D), dtype=jnp.float32)
    pe = pe.at[:, 0::2].set(jnp.sin(position * div_term))
    pe = pe.at[:, 1::2].set(jnp.cos((position * div_term)[:, : D // 2]))
    return (x.astype(jnp.float32) + pe[None, :S, :]).astype(x.dtype)


if __name__ == "__main__":
    key = jax.random.PRNGKey(0)

    # Primary shape implied by the module's forward: [batch, seq_len, d_model]
    batch, seq_len, d_model = 2, 8, 32
    x = jax.random.normal(key, (batch, seq_len, d_model), dtype=jnp.float32)
    out = jax.block_until_ready(positional_encoding(x))
    ref = positional_encoding_ref(x)
    assert out.shape == x.shape and out.dtype == x.dtype
    assert jnp.allclose(out, ref, atol=1e-5, rtol=1e-5)

    # Exercise the lcm lane-dense fold (D=48 -> fold by 8 -> C=384), f32 exact check.
    k2 = jax.random.PRNGKey(1)
    x2 = jax.random.normal(k2, (2, 64, 48), dtype=jnp.float32)
    out2 = jax.block_until_ready(positional_encoding(x2))
    assert jnp.allclose(out2, positional_encoding_ref(x2), atol=1e-5, rtol=1e-5)

    # Exercise the bf16 pe path (pe stored in bf16, add in f32, cast back).
    x3 = jax.random.normal(jax.random.PRNGKey(2), (2, 64, 48), dtype=jnp.bfloat16)
    out3 = jax.block_until_ready(positional_encoding(x3))
    ref3 = positional_encoding_ref(x3)
    assert out3.shape == x3.shape and out3.dtype == x3.dtype
    assert jnp.allclose(out3.astype(jnp.float32), ref3.astype(jnp.float32), atol=5e-2, rtol=5e-2)

    print("KERNEL_OK")
</pallas_src>

<mosaic_0001>
module attributes {stable_mosaic.version = 11 : i64} {
  func.func @_add_pe_kernel(%arg0: i32, %arg1: i32, %arg2: memref<2x2x128xf32, #tpu.memory_space<vmem>>, %arg3: memref<2x128xf32, #tpu.memory_space<vmem>>, %arg4: memref<2x2x128xf32, #tpu.memory_space<vmem>>) attributes {dimension_semantics = [#tpu.dimension_semantics<parallel>, #tpu.dimension_semantics<parallel>], iteration_bounds = array<i64: 1, 1>, scalar_prefetch = 0 : i64, scratch_operands = 0 : i64, tpu.core_type = #tpu.core_type<tc>, window_params = [{transform_indices = @transform_0, window_bounds = array<i64: 2, 2, 128>}, {transform_indices = @transform_1, window_bounds = array<i64: 2, 128>}, {transform_indices = @transform_2, window_bounds = array<i64: 2, 2, 128>}]} {
    %c0 = arith.constant 0 : index
    %c0_0 = arith.constant 0 : index
    %c0_1 = arith.constant 0 : index
    %0 = vector.load %arg2[%c0, %c0_0, %c0_1] : memref<2x2x128xf32, #tpu.memory_space<vmem>>, vector<2x2x128xf32>
    %c0_2 = arith.constant 0 : index
    %c0_3 = arith.constant 0 : index
    %1 = vector.load %arg3[%c0_2, %c0_3] : memref<2x128xf32, #tpu.memory_space<vmem>>, vector<2x128xf32>
    %2 = vector.shape_cast %1 : vector<2x128xf32> to vector<1x2x128xf32>
    %3 = vector.broadcast %2 : vector<1x2x128xf32> to vector<2x2x128xf32>
    %4 = arith.addf %0, %3 : vector<2x2x128xf32>
    %c0_4 = arith.constant 0 : index
    %c0_5 = arith.constant 0 : index
    %c0_6 = arith.constant 0 : index
    %5 = vector.load %arg4[%c0_4, %c0_5, %c0_6] : memref<2x2x128xf32, #tpu.memory_space<vmem>>, vector<2x2x128xf32>
    tpu.vector_store %arg4[%c0_4, %c0_5, %c0_6], %4 {strides = array<i32>} : memref<2x2x128xf32, #tpu.memory_space<vmem>>, vector<2x2x128xf32>,
    return
  }
  func.func @transform_0(%arg0: i32, %arg1: i32) -> (i32, i32, i32) {
    %c0_i32 = arith.constant 0 : i32
    %c0_i32_0 = arith.constant 0 : i32
    return %arg1, %arg0, %c0_i32 : i32, i32, i32
  }
  func.func @transform_1(%arg0: i32, %arg1: i32) -> (i32, i32) {
    %c0_i32 = arith.constant 0 : i32
    %c0_i32_0 = arith.constant 0 : i32
    return %arg0, %c0_i32 : i32, i32
  }
  func.func @transform_2(%arg0: i32, %arg1: i32) -> (i32, i32, i32) {
    %c0_i32 = arith.constant 0 : i32
    %c0_i32_0 = arith.constant 0 : i32
    return %arg1, %arg0, %c0_i32 : i32, i32, i32
  }
}

</mosaic_0001>

<llo_original>
// kernel: _pe_add.1
$region0: #{_pe_add.1}
  #allocation0 [shape = 'u32[]', space=smem, size = 0x4, offset = 0x4, fixed_abs, tag = 'smem constant byte address 0x4 - core index']
  #allocation1 [shape = 'u32[72,128]{1,0:T(1,128)}', space=vmem, size = 0x9000, scoped, tag = 'internal scratch']
  %s0 = inlined_call_operand.vmem [shape: f32[2,2,128], index: 0, kind: input, shape index: {}]
  %s1 = inlined_call_operand.vmem [shape: f32[2,128], index: 1, kind: input, shape index: {}]
  %s2 = inlined_call_operand.vmem [shape: f32[2,2,128], index: 2, kind: output, shape index: {}]
  %s3 = sld [smem:[#allocation0]]
  $region18: #{_pe_add.1} parent=0
    _
  %s5 = ssub.s32 1, %s3
  %s6 = scalar_select 0, %s5, %s3
  // Predicated region
  $region2: #{_pe_add.1} parent=0 // pred_check
    _
  $region3: #{_pe_add.1} parent=0 // pred_check_branch
    %8 = sbr.rel (0) target = $region5
  $region4: #{_pe_add.1} parent=0 // pred_region
    _
  $region5: #{_pe_add.1} parent=0 // pred_fallthru
    _
  // Predicated region
  $region6: #{_pe_add.1} parent=0 // pred_check
    _
  $region7: #{_pe_add.1} parent=0 // pred_check_branch
    %10 = sbr.rel (0) target = $region9
  $region8: #{_pe_add.1} parent=0 // pred_region
    _
  $region9: #{_pe_add.1} parent=0 // pred_fallthru
    _
  %v11 = vld [vmem:[%s0] sm:$0x3]
  %v12 = vld [vmem:[%s0 + $0x2] sm:$0x3]
  %v13 = vld [vmem:[%s1] sm:$0x3]
  %v14 = vadd.f32 %v11, %v13
  %v15 = vadd.f32 %v12, %v13
  %16 = vst [vmem:[%s2] sm:$0x3] %v14
  %17 = vst [vmem:[%s2 + $0x2] sm:$0x3] %v15
  // Predicated region
  $region10: #{_pe_add.1} parent=0 // pred_check
    _
  $region11: #{_pe_add.1} parent=0 // pred_check_branch
    %19 = sbr.rel (0) target = $region13
  $region12: #{_pe_add.1} parent=0 // pred_region
    _
  $region13: #{_pe_add.1} parent=0 // pred_fallthru
    _
  // Predicated region
  $region14: #{_pe_add.1} parent=0 // pred_check
    _
  $region15: #{_pe_add.1} parent=0 // pred_check_branch
    %21 = sbr.rel (0) target = $region17
  $region16: #{_pe_add.1} parent=0 // pred_region
    _
  $region17: #{_pe_add.1} parent=0 // pred_fallthru
    _

</llo_original>
